<compile_context>
chip_gen: v7x
topology: tpu7x:2x2x1
jax: 0.10.0
libtpu: 0.0.40
codegen_flags: <defaults>
</compile_context>

<pallas_src>
import functools

import jax
import jax.numpy as jnp
from jax.experimental import pallas as pl
from jax.experimental.pallas import tpu as pltpu

EPS = 1e-5
LANE = 128
VMEM_LIMIT = 32 * 1024 * 1024  # fits default scoped VMEM on v5e/v6e/v7x


def _round_up(x, m):
    return (x + m - 1) // m * m


# ---------------------------------------------------------------------------
# Pallas kernels
# ---------------------------------------------------------------------------
def _matmul_stats_kernel(p_ref, w_ref, raw_ref, sum_ref, sq_ref):
    """Tiled conv-as-matmul; accumulates per-channel sum / sum-of-squares across the
    M grid axis in VMEM-resident stats blocks (init at step 0)."""
    acc = jnp.dot(p_ref[...], w_ref[...], preferred_element_type=jnp.float32)
    raw_ref[...] = acc

    @pl.when(pl.program_id(0) == 0)
    def _init():
        sum_ref[...] = jnp.zeros_like(sum_ref)
        sq_ref[...] = jnp.zeros_like(sq_ref)

    sum_ref[...] += jnp.sum(acc, axis=0, keepdims=True)
    sq_ref[...] += jnp.sum(acc * acc, axis=0, keepdims=True)


def _bn_relu_kernel(raw_ref, sum_ref, sq_ref, g_ref, b_ref, y_ref, *, inv_m):
    """BatchNorm (batch stats) + ReLU applied to one row tile of the raw conv output."""
    mean = sum_ref[...] * inv_m
    # NOTE: E[x^2]-E[x]^2 form (matches the reference at these scales); switch to a
    # centered second pass if pre-BN activations develop |mean| >> std.
    var = sq_ref[...] * inv_m - mean * mean
    scale = g_ref[...] * jax.lax.rsqrt(var + EPS)
    shift = b_ref[...] - mean * scale
    y_ref[...] = jnp.maximum(raw_ref[...] * scale + shift, 0.0).astype(y_ref.dtype)


def _bn_relu_add_kernel(raw_ref, sum_ref, sq_ref, g_ref, b_ref, xi_ref, wi_ref,
                        o_ref, *, inv_m):
    """BN + ReLU + identity branch (1x1x1 conv == pointwise matmul) add."""
    mean = sum_ref[...] * inv_m
    var = sq_ref[...] * inv_m - mean * mean
    scale = g_ref[...] * jax.lax.rsqrt(var + EPS)
    shift = b_ref[...] - mean * scale
    y = jnp.maximum(raw_ref[...] * scale + shift, 0.0)
    ident = jnp.dot(xi_ref[...], wi_ref[...], preferred_element_type=jnp.float32)
    o_ref[...] = (y + ident).astype(o_ref.dtype)


# ---------------------------------------------------------------------------
# Pallas call wrappers (one conv + BN + ReLU [+ identity add] stage)
# ---------------------------------------------------------------------------
def _conv_bn_relu(patches, w_mat, gamma, beta, m_real, tile_m, *,
                  x_id=None, wi_mat=None, out_dtype=jnp.float32):
    """patches: [m_pad, kc] (kc multiple of 128), w_mat: [kc, cpad], gamma/beta: [1, cpad],
    optional x_id: [m_pad, ci], wi_mat: [ci, cpad]. Returns [m_pad, cpad] in out_dtype."""
    m_pad, kc = patches.shape
    cpad = w_mat.shape[1]
    grid = (m_pad // tile_m,)

    # ---- pass 1: matmul + per-channel sum / sumsq accumulation ----
    raw, s1, s2 = pl.pallas_call(
        _matmul_stats_kernel,
        out_shape=(jax.ShapeDtypeStruct((m_pad, cpad), jnp.float32),
                   jax.ShapeDtypeStruct((1, cpad), jnp.float32),
                   jax.ShapeDtypeStruct((1, cpad), jnp.float32)),
        grid=grid,
        in_specs=[pl.BlockSpec((tile_m, kc), lambda i: (i, 0)),
                  pl.BlockSpec((kc, cpad), lambda i: (0, 0))],
        out_specs=(pl.BlockSpec((tile_m, cpad), lambda i: (i, 0)),
                   pl.BlockSpec((1, cpad), lambda i: (0, 0)),
                   pl.BlockSpec((1, cpad), lambda i: (0, 0))),
        compiler_params=pltpu.CompilerParams(
            dimension_semantics=("arbitrary",),  # stats block revisited every step
            vmem_limit_bytes=VMEM_LIMIT),
    )(patches, w_mat)

    inv_m = 1.0 / float(m_real)

    # ---- pass 2: BN + ReLU (+ identity add), row-parallel ----
    if x_id is None:
        return pl.pallas_call(
            functools.partial(_bn_relu_kernel, inv_m=inv_m),
            out_shape=jax.ShapeDtypeStruct((m_pad, cpad), out_dtype),
            grid=grid,
            in_specs=[pl.BlockSpec((tile_m, cpad), lambda i: (i, 0)),
                      pl.BlockSpec((1, cpad), lambda i: (0, 0)),
                      pl.BlockSpec((1, cpad), lambda i: (0, 0)),
                      pl.BlockSpec((1, cpad), lambda i: (0, 0)),
                      pl.BlockSpec((1, cpad), lambda i: (0, 0))],
            out_specs=pl.BlockSpec((tile_m, cpad), lambda i: (i, 0)),
            compiler_params=pltpu.CompilerParams(
                dimension_semantics=("parallel",), vmem_limit_bytes=VMEM_LIMIT),
        )(raw, s1, s2, gamma, beta)

    ci = x_id.shape[1]
    return pl.pallas_call(
        functools.partial(_bn_relu_add_kernel, inv_m=inv_m),
        out_shape=jax.ShapeDtypeStruct((m_pad, cpad), out_dtype),
        grid=grid,
        in_specs=[pl.BlockSpec((tile_m, cpad), lambda i: (i, 0)),
                  pl.BlockSpec((1, cpad), lambda i: (0, 0)),
                  pl.BlockSpec((1, cpad), lambda i: (0, 0)),
                  pl.BlockSpec((1, cpad), lambda i: (0, 0)),
                  pl.BlockSpec((1, cpad), lambda i: (0, 0)),
                  pl.BlockSpec((tile_m, ci), lambda i: (i, 0)),
                  pl.BlockSpec((ci, cpad), lambda i: (0, 0))],
        out_specs=pl.BlockSpec((tile_m, cpad), lambda i: (i, 0)),
        compiler_params=pltpu.CompilerParams(
            dimension_semantics=("parallel",), vmem_limit_bytes=VMEM_LIMIT),
    )(raw, s1, s2, gamma, beta, x_id, wi_mat)


# ---------------------------------------------------------------------------
# JAX glue
# ---------------------------------------------------------------------------
def _im2col_cl(x_cl, k):
    """Channels-last im2col: x [N,D,H,W,C] -> [N*D*H*W, C*k^3].

    Row order (n,d,h,w); column order c*k^3 + (kd*k^2 + kh*k + kw), matching a weight
    reshaped [Cin, kd, kh, kw, Cout] -> [Cin*k^3, Cout].
    """
    pad = k // 2
    n, d, h, w, c = x_cl.shape
    xp = jnp.pad(x_cl, ((0, 0), (pad, pad), (pad, pad), (pad, pad), (0, 0)))
    pieces = []
    for kd in range(k):
        for kh in range(k):
            for kw in range(k):
                pieces.append(xp[:, kd:kd + d, kh:kh + h, kw:kw + w, :])
    p = jnp.stack(pieces, axis=-1)                 # [N, D, H, W, C, k^3]
    return p.reshape(n * d * h * w, c * k ** 3)


def residual_block(x, params, k=3, tile_m=512, use_bf16=False):
    """x: [N, Cin, D, H, W] float32 (NCDHW). Returns [N, Cout, D, H, W] float32."""
    w1, g1, b1 = params["w1"], params["g1"], params["b1"]
    w2, g2, b2 = params["w2"], params["g2"], params["b2"]
    wi = params.get("wi", None)

    n, cin, d, h, w = x.shape
    cout = w1.shape[0]
    k3 = k ** 3
    m_real = n * d * h * w
    tile_m = min(tile_m, _round_up(m_real, 8))
    m_pad = _round_up(m_real, tile_m)
    cpad = _round_up(cout, LANE)
    kc1 = _round_up(cin * k3, LANE)
    kc2 = _round_up(cout * k3, LANE)
    ci_pad = _round_up(cin, 8)
    mm_dtype = jnp.bfloat16 if use_bf16 else jnp.float32

    # Single layout change at the boundary: NCDHW -> channels-last.
    x_cl = jnp.transpose(x, (0, 2, 3, 4, 1))                        # [N,D,H,W,Cin]

    # Weights / BN params, zero-padded lane-dense (padding sliced off at the end).
    w1m = jnp.transpose(w1, (1, 2, 3, 4, 0)).reshape(cin * k3, cout)
    w2m = jnp.transpose(w2, (1, 2, 3, 4, 0)).reshape(cout * k3, cout)
    w1m = jnp.pad(w1m, ((0, kc1 - cin * k3), (0, cpad - cout))).astype(mm_dtype)
    w2m = jnp.pad(w2m, ((0, kc2 - cout * k3), (0, cpad - cout))).astype(mm_dtype)
    g1p = jnp.pad(g1.reshape(1, cout), ((0, 0), (0, cpad - cout)))
    b1p = jnp.pad(b1.reshape(1, cout), ((0, 0), (0, cpad - cout)))
    g2p = jnp.pad(g2.reshape(1, cout), ((0, 0), (0, cpad - cout)))
    b2p = jnp.pad(b2.reshape(1, cout), ((0, 0), (0, cpad - cout)))

    if wi is None:                      # nn.Identity branch (Cin == Cout)
        wim = jnp.eye(cin, cout, dtype=jnp.float32)
    else:                               # 1x1x1 conv branch
        wim = jnp.transpose(wi[:, :, 0, 0, 0], (1, 0))              # [Cin, Cout]
    wim = jnp.pad(wim, ((0, ci_pad - cin), (0, cpad - cout)))

    # ---- conv1 + bn1 + relu ----
    p1 = _im2col_cl(x_cl.astype(mm_dtype), k)                       # [m_real, Cin*k3]
    p1 = jnp.pad(p1, ((0, m_pad - m_real), (0, kc1 - cin * k3)))
    y1 = _conv_bn_relu(p1, w1m, g1p, b1p, m_real, tile_m, out_dtype=mm_dtype)

    # ---- conv2 + bn2 + relu + identity add (y1 is already channels-last flat) ----
    y1_cl = y1[:m_real, :cout].reshape(n, d, h, w, cout)
    p2 = _im2col_cl(y1_cl, k)                                       # [m_real, Cout*k3]
    p2 = jnp.pad(p2, ((0, m_pad - m_real), (0, kc2 - cout * k3)))
    x_id = jnp.pad(x_cl.reshape(m_real, cin),
                   ((0, m_pad - m_real), (0, ci_pad - cin)))
    out = _conv_bn_relu(p2, w2m, g2p, b2p, m_real, tile_m,
                        x_id=x_id, wi_mat=wim, out_dtype=jnp.float32)

    out = out[:m_real, :cout].reshape(n, d, h, w, cout)
    return jnp.transpose(out, (0, 4, 1, 2, 3))


# ---------------------------------------------------------------------------
# Pure-JAX reference (mirrors the PyTorch module in training-mode BN)
# ---------------------------------------------------------------------------
def _conv3d_ref(x, w):
    pad = w.shape[2] // 2
    return jax.lax.conv_general_dilated(
        x, w, window_strides=(1, 1, 1), padding=((pad, pad),) * 3,
        dimension_numbers=("NCDHW", "OIDHW", "NCDHW"))


def _bn_relu_ref(y, g, b):
    mean = jnp.mean(y, axis=(0, 2, 3, 4), keepdims=True)
    var = jnp.mean(jnp.square(y - mean), axis=(0, 2, 3, 4), keepdims=True)
    yn = (y - mean) * jax.lax.rsqrt(var + EPS)
    yn = yn * g.reshape(1, -1, 1, 1, 1) + b.reshape(1, -1, 1, 1, 1)
    return jnp.maximum(yn, 0.0)


def residual_block_ref(x, params):
    ident = _conv3d_ref(x, params["wi"]) if params.get("wi") is not None else x
    y = _bn_relu_ref(_conv3d_ref(x, params["w1"]), params["g1"], params["b1"])
    y = _bn_relu_ref(_conv3d_ref(y, params["w2"]), params["g2"], params["b2"])
    return y + ident


# ---------------------------------------------------------------------------
if __name__ == "__main__":
    key = jax.random.PRNGKey(0)
    N, Cin, Cout, D, H, W, K = 2, 4, 8, 8, 8, 8, 3
    ks = jax.random.split(key, 8)
    x = jax.random.normal(ks[0], (N, Cin, D, H, W), jnp.float32)
    params = dict(
        w1=jax.random.normal(ks[1], (Cout, Cin, K, K, K), jnp.float32) * 0.1,
        g1=1.0 + 0.1 * jax.random.normal(ks[2], (Cout,), jnp.float32),
        b1=0.1 * jax.random.normal(ks[3], (Cout,), jnp.float32),
        w2=jax.random.normal(ks[4], (Cout, Cout, K, K, K), jnp.float32) * 0.1,
        g2=1.0 + 0.1 * jax.random.normal(ks[5], (Cout,), jnp.float32),
        b2=0.1 * jax.random.normal(ks[6], (Cout,), jnp.float32),
        wi=jax.random.normal(ks[7], (Cout, Cin, 1, 1, 1), jnp.float32) * 0.1,
    )

    ref = jax.block_until_ready(residual_block_ref(x, params))

    # f32 path: tight tolerance vs. reference.
    out = jax.block_until_ready(residual_block(x, params, k=K, use_bf16=False))
    assert out.shape == (N, Cout, D, H, W), out.shape
    assert jnp.allclose(out, ref, atol=1e-3, rtol=1e-3), float(jnp.max(jnp.abs(out - ref)))

    # bf16 matmul-input path (halves patch/weight HBM traffic, bf16 MXU): looser tolerance.
    out_bf16 = jax.block_until_ready(residual_block(x, params, k=K, use_bf16=True))
    assert out_bf16.shape == (N, Cout, D, H, W), out_bf16.shape
    assert jnp.allclose(out_bf16, ref, atol=5e-2, rtol=5e-2), \
        float(jnp.max(jnp.abs(out_bf16 - ref)))

    print("KERNEL_OK")
</pallas_src>

<mosaic_0001>
module attributes {stable_mosaic.version = 11 : i64} {
  func.func @_matmul_stats_kernel(%arg0: i32, %arg1: memref<512x128xf32, #tpu.memory_space<vmem>>, %arg2: memref<128x128xf32, #tpu.memory_space<vmem>>, %arg3: memref<512x128xf32, #tpu.memory_space<vmem>>, %arg4: memref<1x128xf32, #tpu.memory_space<vmem>>, %arg5: memref<1x128xf32, #tpu.memory_space<vmem>>) attributes {dimension_semantics = [#tpu.dimension_semantics<arbitrary>], iteration_bounds = array<i64: 2>, scalar_prefetch = 0 : i64, scratch_operands = 0 : i64, tpu.core_type = #tpu.core_type<tc>, window_params = [{transform_indices = @transform_0, window_bounds = array<i64: 512, 128>}, {pipeline_mode = #tpu.pipeline_mode<synchronous>, transform_indices = @transform_1, window_bounds = array<i64: 128, 128>}, {transform_indices = @transform_2, window_bounds = array<i64: 512, 128>}, {pipeline_mode = #tpu.pipeline_mode<synchronous>, transform_indices = @transform_3, window_bounds = array<i64: 1, 128>}, {pipeline_mode = #tpu.pipeline_mode<synchronous>, transform_indices = @transform_4, window_bounds = array<i64: 1, 128>}]} {
    %c0 = arith.constant 0 : index
    %c0_0 = arith.constant 0 : index
    %0 = vector.load %arg1[%c0, %c0_0] : memref<512x128xf32, #tpu.memory_space<vmem>>, vector<512x128xf32>
    %c0_1 = arith.constant 0 : index
    %c0_2 = arith.constant 0 : index
    %1 = vector.load %arg2[%c0_1, %c0_2] : memref<128x128xf32, #tpu.memory_space<vmem>>, vector<128x128xf32>
    %cst = arith.constant dense<0.000000e+00> : vector<512x128xf32>
    %2 = tpu.matmul %0, %1, %cst {dimension_numbers = #tpu.dot_dimension_numbers<[1], [0], [0], [1], [0, 0, 1, 1], [], []>} : vector<512x128xf32>, vector<128x128xf32>, vector<512x128xf32> -> vector<512x128xf32>
    %c0_3 = arith.constant 0 : index
    %c0_4 = arith.constant 0 : index
    %3 = vector.load %arg3[%c0_3, %c0_4] : memref<512x128xf32, #tpu.memory_space<vmem>>, vector<512x128xf32>
    tpu.vector_store %arg3[%c0_3, %c0_4], %2 {strides = array<i32>} : memref<512x128xf32, #tpu.memory_space<vmem>>, vector<512x128xf32>,
    %c0_i32 = arith.constant 0 : i32
    %4 = arith.cmpi eq, %arg0, %c0_i32 : i32
    %5 = arith.extui %4 : i1 to i32
    %c0_i32_5 = arith.constant 0 : i32
    %6 = arith.cmpi ne, %5, %c0_i32_5 : i32
    scf.if %6 {
      %cst_16 = arith.constant 0.000000e+00 : f32
      %18 = vector.broadcast %cst_16 : f32 to vector<1x128xf32>
      %c0_17 = arith.constant 0 : index
      %c0_18 = arith.constant 0 : index
      %19 = vector.load %arg4[%c0_17, %c0_18] : memref<1x128xf32, #tpu.memory_space<vmem>>, vector<1x128xf32>
      tpu.vector_store %arg4[%c0_17, %c0_18], %18 {strides = array<i32>} : memref<1x128xf32, #tpu.memory_space<vmem>>, vector<1x128xf32>,
      %cst_19 = arith.constant 0.000000e+00 : f32
      %20 = vector.broadcast %cst_19 : f32 to vector<1x128xf32>
      %c0_20 = arith.constant 0 : index
      %c0_21 = arith.constant 0 : index
      %21 = vector.load %arg5[%c0_20, %c0_21] : memref<1x128xf32, #tpu.memory_space<vmem>>, vector<1x128xf32>
      tpu.vector_store %arg5[%c0_20, %c0_21], %20 {strides = array<i32>} : memref<1x128xf32, #tpu.memory_space<vmem>>, vector<1x128xf32>,
    } else {
    }
    %c0_6 = arith.constant 0 : index
    %c0_7 = arith.constant 0 : index
    %7 = vector.load %arg4[%c0_6, %c0_7] : memref<1x128xf32, #tpu.memory_space<vmem>>, vector<1x128xf32>
    %cst_8 = arith.constant dense<0.000000e+00> : vector<128xf32>
    %8 = vector.multi_reduction <add>, %2, %cst_8 [0] : vector<512x128xf32> to vector<128xf32>
    %9 = vector.shape_cast %8 : vector<128xf32> to vector<1x128xf32>
    %10 = arith.addf %7, %9 : vector<1x128xf32>
    %c0_9 = arith.constant 0 : index
    %c0_10 = arith.constant 0 : index
    %11 = vector.load %arg4[%c0_9, %c0_10] : memref<1x128xf32, #tpu.memory_space<vmem>>, vector<1x128xf32>
    tpu.vector_store %arg4[%c0_9, %c0_10], %10 {strides = array<i32>} : memref<1x128xf32, #tpu.memory_space<vmem>>, vector<1x128xf32>,
    %c0_11 = arith.constant 0 : index
    %c0_12 = arith.constant 0 : index
    %12 = vector.load %arg5[%c0_11, %c0_12] : memref<1x128xf32, #tpu.memory_space<vmem>>, vector<1x128xf32>
    %13 = arith.mulf %2, %2 : vector<512x128xf32>
    %cst_13 = arith.constant dense<0.000000e+00> : vector<128xf32>
    %14 = vector.multi_reduction <add>, %13, %cst_13 [0] : vector<512x128xf32> to vector<128xf32>
    %15 = vector.shape_cast %14 : vector<128xf32> to vector<1x128xf32>
    %16 = arith.addf %12, %15 : vector<1x128xf32>
    %c0_14 = arith.constant 0 : index
    %c0_15 = arith.constant 0 : index
    %17 = vector.load %arg5[%c0_14, %c0_15] : memref<1x128xf32, #tpu.memory_space<vmem>>, vector<1x128xf32>
    tpu.vector_store %arg5[%c0_14, %c0_15], %16 {strides = array<i32>} : memref<1x128xf32, #tpu.memory_space<vmem>>, vector<1x128xf32>,
    return
  }
  func.func @transform_0(%arg0: i32) -> (i32, i32) {
    %c0_i32 = arith.constant 0 : i32
    %c0_i32_0 = arith.constant 0 : i32
    return %arg0, %c0_i32 : i32, i32
  }
  func.func @transform_1(%arg0: i32) -> (i32, i32) {
    %c0_i32 = arith.constant 0 : i32
    %c0_i32_0 = arith.constant 0 : i32
    %c0_i32_1 = arith.constant 0 : i32
    return %c0_i32, %c0_i32_0 : i32, i32
  }
  func.func @transform_2(%arg0: i32) -> (i32, i32) {
    %c0_i32 = arith.constant 0 : i32
    %c0_i32_0 = arith.constant 0 : i32
    return %arg0, %c0_i32 : i32, i32
  }
  func.func @transform_3(%arg0: i32) -> (i32, i32) {
    %c0_i32 = arith.constant 0 : i32
    %c0_i32_0 = arith.constant 0 : i32
    %c0_i32_1 = arith.constant 0 : i32
    return %c0_i32, %c0_i32_0 : i32, i32
  }
  func.func @transform_4(%arg0: i32) -> (i32, i32) {
    %c0_i32 = arith.constant 0 : i32
    %c0_i32_0 = arith.constant 0 : i32
    %c0_i32_1 = arith.constant 0 : i32
    return %c0_i32, %c0_i32_0 : i32, i32
  }
}

</mosaic_0001>

<llo_original>
// kernel: tpu_custom_call.1
$region0: #{tpu_custom_call.1}
  #allocation0 [shape = 'u32[]', space=smem, size = 0x4, offset = 0x4, fixed_abs, tag = 'smem constant byte address 0x4 - core index']
  #allocation1 [shape = 'u32[144,128]{1,0:T(1,128)}', space=vmem, size = 0x12000, scoped, tag = 'internal scratch']
  %s0 = inlined_call_operand.hbm [shape: f32[1024,128], index: 0, kind: input, shape index: {}]
  %s1 = inlined_call_operand.hbm [shape: f32[128,128], index: 1, kind: input, shape index: {}]
  %s2 = inlined_call_operand.hbm [shape: f32[1024,128], index: 2, kind: output, shape index: {0}]
  %s3 = inlined_call_operand.hbm [shape: f32[1,128], index: 3, kind: output, shape index: {1}]
  %s4 = inlined_call_operand.hbm [shape: f32[1,128], index: 4, kind: output, shape index: {2}]
  %5 = xla_tuple %s2, %s3, %s4
  %s6 = sld [smem:[#allocation0]]
  $region69: #{tpu_custom_call.1} parent=0
    _
  %s8 = ssub.s32 1, %s6
  %s9 = scalar_select 0, %s8, %s6
  $region1: #{tpu_custom_call.1} parent=0
    #allocation2 [shape = 'u8[524288]{0}', space=vmem, size = 0x80000, scoped, tag = 'input window, operand 0']
    #allocation3 [shape = 's32[2]{0}', space=sflag, size = 0x8, scoped, tag = 'scoped memory for tpu_custom_call.1']
    #allocation4 [shape = 's32[2]{0}', space=sflag, size = 0x8, scoped, tag = 'scoped memory for tpu_custom_call.1']
    #allocation5 [shape = 'u8[65536]{0}', space=vmem, size = 0x10000, scoped, tag = 'input window, operand 1, single buffered']
    #allocation6 [shape = 's32[1]{0}', space=sflag, size = 0x4, scoped, tag = 'scoped memory for tpu_custom_call.1']
    #allocation7 [shape = 'u8[524288]{0}', space=vmem, size = 0x80000, scoped, tag = 'output window, operand 0']
    #allocation8 [shape = 'u8[512]{0}', space=vmem, size = 0x400, scoped, tag = 'output window, operand 1, single buffered']
    #allocation9 [shape = 's32[1]{0}', space=sflag, size = 0x4, scoped, tag = 'scoped memory for tpu_custom_call.1']
    #allocation10 [shape = 'u8[512]{0}', space=vmem, size = 0x400, scoped, tag = 'output window, operand 2, single buffered']
    %10 = vsyncpa [#allocation3], 0
    %s11 = scalar_lea.sflag [#allocation3], 1
    %12 = vsyncpa %s11, 0
    %13 = vsyncpa [#allocation6], 0
    %14 = vsyncpa [#allocation4], 0
    %s15 = scalar_lea.sflag [#allocation4], 1
    %16 = vsyncpa %s15, 0
    %17 = vsyncpa [#allocation9], 0
    loop: start=0, step=1, limit=4
    $region2: #{tpu_custom_call.1} parent=1 // loop_pre_header
      _
    $region3: #{tpu_custom_call.1} parent=1 // loop_header
      %s19 = sphi 0, %s23
      %p20 = scmp.ge.s32.totalorder %s19, 4
      %s29 = sphi 0, %s31
      %s32 = sphi 0, %s29
      %s33 = sphi 0, %s32
      %s49 = sphi 0, %s33
      %s53 = sphi 0, %s53
      %s55 = sphi 0, %s53
      %s56 = sphi 0, %s55
      %s70 = sphi 0, %s56
      %s76 = sphi 0, %s78
      %s79 = sphi 0, %s76
      %s80 = sphi 0, %s79
      %s96 = sphi 0, %s80
      %s100 = sphi 0, %s100
      %s102 = sphi 0, %s100
      %s103 = sphi 0, %s102
      %s117 = sphi 0, %s103
      %s121 = sphi 0, %s121
      %s123 = sphi 0, %s121
      %s124 = sphi 0, %s123
      %s138 = sphi 0, %s124
    $region4: #{tpu_custom_call.1} parent=1 // loop_header_branch
      %22 = sbr.rel (%p20) target = $region8
    $region5: #{tpu_custom_call.1} parent=1 // loop_body
      %s24 = ssub.s32 %s19, 1
      %s25 = ssub.s32 %s19, 2
      %s26 = sadd.s32 %s19, 1
      %s27 = ssub.s32 %s19, %s26
      %p28 = scmp.eq.s32.totalorder %s27, 0
      %s30 = sadd.s32 %s29, 1
      %s31 = scalar_select %p28, %s29, %s30
      %p34 = pneg %p28
      %p35 = scmp.eq.s32.totalorder %s19, 1
      %p36 = por %p34, %p35
      %p37 = scmp.ne.s32.totalorder %s29, %s32
      %p38 = scmp.eq.s32.totalorder %s19, 0
      %p39 = por %p37, %p38
      %p40 = scmp.ne.s32.totalorder %s29, %s32
      %p41 = scmp.eq.s32.totalorder %s24, 1
      %p42 = por %p40, %p41
      %p43 = scmp.ne.s32.totalorder %s32, %s33
      %p44 = scmp.eq.s32.totalorder %s24, 0
      %p45 = por %p43, %p44
      %p46 = scmp.ne.s32.totalorder %s32, %s33
      %p47 = scmp.eq.s32.totalorder %s25, 1
      %p48 = por %p46, %p47
      %p50 = scmp.ne.s32.totalorder %s33, %s49
      %p51 = scmp.eq.s32.totalorder %s25, 0
      %p52 = por %p50, %p51
      %s54 = sadd.s32 %s53, 1
      %p57 = scmp.eq.s32.totalorder %s19, 1
      %p58 = scmp.ne.s32.totalorder %s53, %s55
      %p59 = scmp.eq.s32.totalorder %s19, 0
      %p60 = por %p58, %p59
      %p61 = scmp.ne.s32.totalorder %s53, %s55
      %p62 = scmp.eq.s32.totalorder %s24, 1
      %p63 = por %p61, %p62
      %p64 = scmp.ne.s32.totalorder %s55, %s56
      %p65 = scmp.eq.s32.totalorder %s24, 0
      %p66 = por %p64, %p65
      %p67 = scmp.ne.s32.totalorder %s55, %s56
      %p68 = scmp.eq.s32.totalorder %s25, 1
      %p69 = por %p67, %p68
      %p71 = scmp.ne.s32.totalorder %s56, %s70
      %p72 = scmp.eq.s32.totalorder %s25, 0
      %p73 = por %p71, %p72
      %s74 = ssub.s32 %s19, %s26
      %p75 = scmp.eq.s32.totalorder %s74, 0
      %s77 = sadd.s32 %s76, 1
      %s78 = scalar_select %p75, %s76, %s77
      %p81 = pneg %p75
      %p82 = scmp.eq.s32.totalorder %s19, 1
      %p83 = por %p81, %p82
      %p84 = scmp.ne.s32.totalorder %s76, %s79
      %p85 = scmp.eq.s32.totalorder %s19, 0
      %p86 = por %p84, %p85
      %p87 = scmp.ne.s32.totalorder %s76, %s79
      %p88 = scmp.eq.s32.totalorder %s24, 1
      %p89 = por %p87, %p88
      %p90 = scmp.ne.s32.totalorder %s79, %s80
      %p91 = scmp.eq.s32.totalorder %s24, 0
      %p92 = por %p90, %p91
      %p93 = scmp.ne.s32.totalorder %s79, %s80
      %p94 = scmp.eq.s32.totalorder %s25, 1
      %p95 = por %p93, %p94
      %p97 = scmp.ne.s32.totalorder %s80, %s96
      %p98 = scmp.eq.s32.totalorder %s25, 0
      %p99 = por %p97, %p98
      %s101 = sadd.s32 %s100, 1
      %p104 = scmp.eq.s32.totalorder %s19, 1
      %p105 = scmp.ne.s32.totalorder %s100, %s102
      %p106 = scmp.eq.s32.totalorder %s19, 0
      %p107 = por %p105, %p106
      %p108 = scmp.ne.s32.totalorder %s100, %s102
      %p109 = scmp.eq.s32.totalorder %s24, 1
      %p110 = por %p108, %p109
      %p111 = scmp.ne.s32.totalorder %s102, %s103
      %p112 = scmp.eq.s32.totalorder %s24, 0
      %p113 = por %p111, %p112
      %p114 = scmp.ne.s32.totalorder %s102, %s103
      %p115 = scmp.eq.s32.totalorder %s25, 1
      %p116 = por %p114, %p115
      %p118 = scmp.ne.s32.totalorder %s103, %s117
      %p119 = scmp.eq.s32.totalorder %s25, 0
      %p120 = por %p118, %p119
      %s122 = sadd.s32 %s121, 1
      %p125 = scmp.eq.s32.totalorder %s19, 1
      %p126 = scmp.ne.s32.totalorder %s121, %s123
      %p127 = scmp.eq.s32.totalorder %s19, 0
      %p128 = por %p126, %p127
      %p129 = scmp.ne.s32.totalorder %s121, %s123
      %p130 = scmp.eq.s32.totalorder %s24, 1
      %p131 = por %p129, %p130
      %p132 = scmp.ne.s32.totalorder %s123, %s124
      %p133 = scmp.eq.s32.totalorder %s24, 0
      %p134 = por %p132, %p133
      %p135 = scmp.ne.s32.totalorder %s123, %s124
      %p136 = scmp.eq.s32.totalorder %s25, 1
      %p137 = por %p135, %p136
      %p139 = scmp.ne.s32.totalorder %s124, %s138
      %p140 = scmp.eq.s32.totalorder %s25, 0
      %p141 = por %p139, %p140
      %p142 = scmp.le.s32.totalorder 1, %s19
      %p143 = scmp.lt.s32.totalorder %s19, 3
      %p144 = pnand %p142, %p143
      %p145 = pneg %p144
      // Predicated region
      $region9: #{tpu_custom_call.1} parent=5 // pred_check
        _
      $region10: #{tpu_custom_call.1} parent=5 // pred_check_branch
        %147 = sbr.rel (%p144) target = $region12
      $region11: #{tpu_custom_call.1} parent=5 // pred_region
        %s148 = ssub.s32 %s19, 1
        // Predicated region
        $region13: #{tpu_custom_call.1} parent=11 // pred_check
          %p149 = pneg %p66
        $region14: #{tpu_custom_call.1} parent=11 // pred_check_branch
          %151 = sbr.rel (%p149) target = $region16
        $region15: #{tpu_custom_call.1} parent=11 // pred_region
          %s153 = ssub.s32 2048, 2048
          %154 = vsyncadd [#allocation6], %s153
          %s155 = sshll.u32 [#allocation5], 4
          %s156 = int_to_ptr.vmem [resolvable:$true] %s155
          %161 = dma.hbm_to_vmem [thread:$0]  %s1, 2048, %s156, [#allocation6], 128, 128, 8
        $region16: #{tpu_custom_call.1} parent=11 // pred_fallthru
          _
      $region12: #{tpu_custom_call.1} parent=5 // pred_fallthru
        _
      %p162 = scmp.lt.s32.totalorder %s19, 2
      // Predicated region
      $region17: #{tpu_custom_call.1} parent=5 // pred_check
        %p163 = pneg %p162
      $region18: #{tpu_custom_call.1} parent=5 // pred_check_branch
        %165 = sbr.rel (%p163) target = $region20
      $region19: #{tpu_custom_call.1} parent=5 // pred_region
        // Predicated region
        $region21: #{tpu_custom_call.1} parent=19 // pred_check
          %p166 = pneg %p39
        $region22: #{tpu_custom_call.1} parent=19 // pred_check_branch
          %168 = sbr.rel (%p166) target = $region24
        $region23: #{tpu_custom_call.1} parent=19 // pred_region
          %s169 = sand.u32 %s29, 1
          %s170 = scalar_lea.sflag [#allocation3], %s169
          %s171 = sand.u32 %s29, 1
          %s172 = smul.addr %s171, 512
          %s173 = scalar_lea.vmem [#allocation2], %s172
          %s174 = smul.u32 64, %s19
          %s176 = ssub.s32 8192, 8192
          %177 = vsyncadd %s170, %s176
          %s178 = smul.addr %s174, 128
          %s179 = scalar_lea.hbm %s0, %s178
          %s180 = sshll.u32 %s173, 4
          %s181 = int_to_ptr.vmem [resolvable:$true] %s180
          %186 = dma.hbm_to_vmem [thread:$0]  %s179, 8192, %s181, %s170, 128, 128, 8
        $region24: #{tpu_custom_call.1} parent=19 // pred_fallthru
          _
      $region20: #{tpu_custom_call.1} parent=5 // pred_fallthru
        _
      %p187 = scmp.le.s32.totalorder 1, %s19
      %p188 = scmp.lt.s32.totalorder %s19, 3
      %p189 = pnand %p187, %p188
      %p190 = pneg %p189
      // Predicated region
      $region25: #{tpu_custom_call.1} parent=5 // pred_check
        _
      $region26: #{tpu_custom_call.1} parent=5 // pred_check_branch
        %192 = sbr.rel (%p189) target = $region28
      $region27: #{tpu_custom_call.1} parent=5 // pred_region
        %s193 = ssub.s32 %s19, 1
        %s194 = sand.u32 %s32, 1
        %s195 = scalar_lea.sflag [#allocation3], %s194
        %s196 = sand.u32 %s32, 1
        %s197 = smul.addr %s196, 512
        %s198 = scalar_lea.vmem [#allocation2], %s197
        // Predicated region
        $region29: #{tpu_custom_call.1} parent=27 // pred_check
          %p199 = pneg %p45
        $region30: #{tpu_custom_call.1} parent=27 // pred_check_branch
          %201 = sbr.rel (%p199) target = $region32
        $region31: #{tpu_custom_call.1} parent=27 // pred_region
          %202 = dma.done %s195, 8192
        $region32: #{tpu_custom_call.1} parent=27 // pred_fallthru
          _
        // Predicated region
        $region33: #{tpu_custom_call.1} parent=27 // pred_check
          %p203 = pneg %p66
        $region34: #{tpu_custom_call.1} parent=27 // pred_check_branch
          %205 = sbr.rel (%p203) target = $region36
        $region35: #{tpu_custom_call.1} parent=27 // pred_region
          %206 = dma.done [#allocation6], 2048
        $region36: #{tpu_custom_call.1} parent=27 // pred_fallthru
          _
        %s207 = sand.u32 %s32, 1
        %s208 = scalar_lea.sflag [#allocation3], %s207
        %s209 = sand.u32 %s32, 1
        %s210 = smul.addr %s209, 512
        %s211 = scalar_lea.vmem [#allocation2], %s210
        %p212 = pneg %p45
        %p213 = pneg %p42
        %p214 = pneg %p66
        %p215 = pneg %p63
        %p216 = pneg %p92
        %p217 = pneg %p89
        %s218 = sand.u32 %s79, 1
        %s219 = scalar_lea.sflag [#allocation4], %s218
        %s220 = sand.u32 %s79, 1
        %s221 = smul.addr %s220, 512
        %s222 = scalar_lea.vmem [#allocation7], %s221
        %p223 = pneg %p113
        %p224 = pneg %p110
        %p225 = pneg %p134
        %p226 = pneg %p131
        %s227 = smul.u32 64, %s24
        %s228 = smul.u32 64, %s24
        %v229 = vld [vmem:[%s198] sm:$0xff]
        %v230 = vld [vmem:[%s198 + $0x8] sm:$0xff]
        %v231 = vld [vmem:[%s198 + $0x10] sm:$0xff]
        %v232 = vld [vmem:[%s198 + $0x18] sm:$0xff]
        %v233 = vld [vmem:[%s198 + $0x20] sm:$0xff]
        %v234 = vld [vmem:[%s198 + $0x28] sm:$0xff]
        %v235 = vld [vmem:[%s198 + $0x30] sm:$0xff]
        %v236 = vld [vmem:[%s198 + $0x38] sm:$0xff]
        %v237 = vld [vmem:[%s198 + $0x40] sm:$0xff]
        %v238 = vld [vmem:[%s198 + $0x48] sm:$0xff]
        %v239 = vld [vmem:[%s198 + $0x50] sm:$0xff]
        %v240 = vld [vmem:[%s198 + $0x58] sm:$0xff]
        %v241 = vld [vmem:[%s198 + $0x60] sm:$0xff]
        %v242 = vld [vmem:[%s198 + $0x68] sm:$0xff]
        %v243 = vld [vmem:[%s198 + $0x70] sm:$0xff]
        %v244 = vld [vmem:[%s198 + $0x78] sm:$0xff]
        %v245 = vld [vmem:[%s198 + $0x80] sm:$0xff]
        %v246 = vld [vmem:[%s198 + $0x88] sm:$0xff]
        %v247 = vld [vmem:[%s198 + $0x90] sm:$0xff]
        %v248 = vld [vmem:[%s198 + $0x98] sm:$0xff]
        %v249 = vld [vmem:[%s198 + $0xa0] sm:$0xff]
        %v250 = vld [vmem:[%s198 + $0xa8] sm:$0xff]
        %v251 = vld [vmem:[%s198 + $0xb0] sm:$0xff]
        %v252 = vld [vmem:[%s198 + $0xb8] sm:$0xff]
        %v253 = vld [vmem:[%s198 + $0xc0] sm:$0xff]
        %v254 = vld [vmem:[%s198 + $0xc8] sm:$0xff]
        %v255 = vld [vmem:[%s198 + $0xd0] sm:$0xff]
        %v256 = vld [vmem:[%s198 + $0xd8] sm:$0xff]
        %v257 = vld [vmem:[%s198 + $0xe0] sm:$0xff]
        %v258 = vld [vmem:[%s198 + $0xe8] sm:$0xff]
        %v259 = vld [vmem:[%s198 + $0xf0] sm:$0xff]
        %v260 = vld [vmem:[%s198 + $0xf8] sm:$0xff]
        %v261 = vld [vmem:[%s198 + $0x100] sm:$0xff]
        %v262 = vld [vmem:[%s198 + $0x108] sm:$0xff]
        %v263 = vld [vmem:[%s198 + $0x110] sm:$0xff]
        %v264 = vld [vmem:[%s198 + $0x118] sm:$0xff]
        %v265 = vld [vmem:[%s198 + $0x120] sm:$0xff]
        %v266 = vld [vmem:[%s198 + $0x128] sm:$0xff]
        %v267 = vld [vmem:[%s198 + $0x130] sm:$0xff]
        %v268 = vld [vmem:[%s198 + $0x138] sm:$0xff]
        %v269 = vld [vmem:[%s198 + $0x140] sm:$0xff]
        %v270 = vld [vmem:[%s198 + $0x148] sm:$0xff]
        %v271 = vld [vmem:[%s198 + $0x150] sm:$0xff]
        %v272 = vld [vmem:[%s198 + $0x158] sm:$0xff]
        %v273 = vld [vmem:[%s198 + $0x160] sm:$0xff]
        %v274 = vld [vmem:[%s198 + $0x168] sm:$0xff]
        %v275 = vld [vmem:[%s198 + $0x170] sm:$0xff]
        %v276 = vld [vmem:[%s198 + $0x178] sm:$0xff]
        %v277 = vld [vmem:[%s198 + $0x180] sm:$0xff]
        %v278 = vld [vmem:[%s198 + $0x188] sm:$0xff]
        %v279 = vld [vmem:[%s198 + $0x190] sm:$0xff]
        %v280 = vld [vmem:[%s198 + $0x198] sm:$0xff]
        %v281 = vld [vmem:[%s198 + $0x1a0] sm:$0xff]
        %v282 = vld [vmem:[%s198 + $0x1a8] sm:$0xff]
        %v283 = vld [vmem:[%s198 + $0x1b0] sm:$0xff]
        %v284 = vld [vmem:[%s198 + $0x1b8] sm:$0xff]
        %v285 = vld [vmem:[%s198 + $0x1c0] sm:$0xff]
        %v286 = vld [vmem:[%s198 + $0x1c8] sm:$0xff]
        %v287 = vld [vmem:[%s198 + $0x1d0] sm:$0xff]
        %v288 = vld [vmem:[%s198 + $0x1d8] sm:$0xff]
        %v289 = vld [vmem:[%s198 + $0x1e0] sm:$0xff]
        %v290 = vld [vmem:[%s198 + $0x1e8] sm:$0xff]
        %v291 = vld [vmem:[%s198 + $0x1f0] sm:$0xff]
        %v292 = vld [vmem:[%s198 + $0x1f8] sm:$0xff]
        %v293 = vld [vmem:[#allocation5] sm:$0xff]
        %v294 = vld [vmem:[#allocation5 + $0x8] sm:$0xff]
        %v295 = vld [vmem:[#allocation5 + $0x10] sm:$0xff]
        %v296 = vld [vmem:[#allocation5 + $0x18] sm:$0xff]
        %v297 = vld [vmem:[#allocation5 + $0x20] sm:$0xff]
        %v298 = vld [vmem:[#allocation5 + $0x28] sm:$0xff]
        %v299 = vld [vmem:[#allocation5 + $0x30] sm:$0xff]
        %v300 = vld [vmem:[#allocation5 + $0x38] sm:$0xff]
        %v301 = vld [vmem:[#allocation5 + $0x40] sm:$0xff]
        %v302 = vld [vmem:[#allocation5 + $0x48] sm:$0xff]
        %v303 = vld [vmem:[#allocation5 + $0x50] sm:$0xff]
        %v304 = vld [vmem:[#allocation5 + $0x58] sm:$0xff]
        %v305 = vld [vmem:[#allocation5 + $0x60] sm:$0xff]
        %v306 = vld [vmem:[#allocation5 + $0x68] sm:$0xff]
        %v307 = vld [vmem:[#allocation5 + $0x70] sm:$0xff]
        %v308 = vld [vmem:[#allocation5 + $0x78] sm:$0xff]
        %309 = vmatprep.subr.mxu0 0.0
        %310 = vmatpush1.msra.mxu0 %v293
        %311 = vmatprep.subr.mxu0 0.0
        %312 = vmatpush1.msra.mxu0 %v294
        %313 = vmatprep.subr.mxu0 0.0
        %314 = vmatpush1.msra.mxu0 %v295
        %315 = vmatprep.subr.mxu0 0.0
        %316 = vmatpush1.msra.mxu0 %v296
        %317 = vmatprep.subr.mxu0 0.0
        %318 = vmatpush1.msra.mxu0 %v297
        %319 = vmatprep.subr.mxu0 0.0
        %320 = vmatpush1.msra.mxu0 %v298
        %321 = vmatprep.subr.mxu0 0.0
        %322 = vmatpush1.msra.mxu0 %v299
        %323 = vmatprep.subr.mxu0 0.0
        %324 = vmatpush1.msra.mxu0 %v300
        %325 = vmatprep.subr.mxu0 0.0
        %326 = vmatpush1.msra.mxu0 %v301
        %327 = vmatprep.subr.mxu0 0.0
        %328 = vmatpush1.msra.mxu0 %v302
        %329 = vmatprep.subr.mxu0 0.0
        %330 = vmatpush1.msra.mxu0 %v303
        %331 = vmatprep.subr.mxu0 0.0
        %332 = vmatpush1.msra.mxu0 %v304
        %333 = vmatprep.subr.mxu0 0.0
        %334 = vmatpush1.msra.mxu0 %v305
        %335 = vmatprep.subr.mxu0 0.0
        %336 = vmatpush1.msra.mxu0 %v306
        %337 = vmatprep.subr.mxu0 0.0
        %338 = vmatpush1.msra.mxu0 %v307
        %339 = vmatprep.subr.mxu0 0.0
        %340 = vmatpush1.msra.mxu0 %v308
        %341 = vmatprep.subr.mxu0 0.0
        %342 = vmatpush1.msra.mxu0 0.0
        %343 = vmatprep.subr.mxu0 0.0
        %344 = vmatpush1.msra.mxu0 0.0
        %345 = vmatprep.subr.mxu0 0.0
        %346 = vmatpush1.msra.mxu0 0.0
        %347 = vmatprep.subr.mxu0 0.0
        %348 = vmatpush1.msra.mxu0 0.0
        %349 = vmatprep.subr.mxu0 0.0
        %350 = vmatpush1.msra.mxu0 0.0
        %351 = vmatprep.subr.mxu0 0.0
        %352 = vmatpush1.msra.mxu0 0.0
        %353 = vmatprep.subr.mxu0 0.0
        %354 = vmatpush1.msra.mxu0 0.0
        %355 = vmatprep.subr.mxu0 0.0
        %356 = vmatpush1.msra.mxu0 0.0
        %357 = vmatprep.subr.mxu0 0.0
        %358 = vmatpush1.msra.mxu0 0.0
        %359 = vmatprep.subr.mxu0 0.0
        %360 = vmatpush1.msra.mxu0 0.0
        %361 = vmatprep.subr.mxu0 0.0
        %362 = vmatpush1.msra.mxu0 0.0
        %363 = vmatprep.subr.mxu0 0.0
        %364 = vmatpush1.msra.mxu0 0.0
        %365 = vmatprep.subr.mxu0 0.0
        %366 = vmatpush1.msra.mxu0 0.0
        %367 = vmatprep.subr.mxu0 0.0
        %368 = vmatpush1.msra.mxu0 0.0
        %369 = vmatprep.subr.mxu0 0.0
        %370 = vmatpush1.msra.mxu0 0.0
        %371 = vmatprep.subr.mxu0 0.0
        %372 = vmatpush1.msra.mxu0 0.0
        %373 = vmatprep.mubr.f32.mxu0 0.0
        %374 = vmatmul.mubr.f32.gmra.mrb[0].mxu0 %v229
        %v375 = vpop.f32.mrb[0].mxu0
        %v376 = vadd.f32 0.0, %v375
        %v377 = vpop.f32.mrb[0].mxu0
        %378 = vmatprep.mubr.f32.mxu0 0.0
        %379 = vmatmul.mubr.f32.gmra.mrb[0].mxu0 %v230
        %v380 = vpop.f32.mrb[0].mxu0
        %v381 = vadd.f32 0.0, %v380
        %v382 = vpop.f32.mrb[0].mxu0
        %383 = vmatprep.mubr.f32.mxu0 0.0
        %384 = vmatmul.mubr.f32.gmra.mrb[0].mxu0 %v231
        %v385 = vpop.f32.mrb[0].mxu0
        %v386 = vadd.f32 0.0, %v385
        %v387 = vpop.f32.mrb[0].mxu0
        %388 = vmatprep.mubr.f32.mxu0 0.0
        %389 = vmatmul.mubr.f32.gmra.mrb[0].mxu0 %v232
        %v390 = vpop.f32.mrb[0].mxu0
        %v391 = vadd.f32 0.0, %v390
        %v392 = vpop.f32.mrb[0].mxu0
        %393 = vmatprep.mubr.f32.mxu0 0.0
        %394 = vmatmul.mubr.f32.gmra.mrb[0].mxu0 %v233
        %v395 = vpop.f32.mrb[0].mxu0
        %v396 = vadd.f32 0.0, %v395
        %v397 = vpop.f32.mrb[0].mxu0
        %398 = vmatprep.mubr.f32.mxu0 0.0
        %399 = vmatmul.mubr.f32.gmra.mrb[0].mxu0 %v234
        %v400 = vpop.f32.mrb[0].mxu0
        %v401 = vadd.f32 0.0, %v400
        %v402 = vpop.f32.mrb[0].mxu0
        %403 = vmatprep.mubr.f32.mxu0 0.0
        %404 = vmatmul.mubr.f32.gmra.mrb[0].mxu0 %v235
        %v405 = vpop.f32.mrb[0].mxu0
        %v406 = vadd.f32 0.0, %v405
        %v407 = vpop.f32.mrb[0].mxu0
        %408 = vmatprep.mubr.f32.mxu0 0.0
        %409 = vmatmul.mubr.f32.gmra.mrb[0].mxu0 %v236
        %v410 = vpop.f32.mrb[0].mxu0
        %v411 = vadd.f32 0.0, %v410
        %v412 = vpop.f32.mrb[0].mxu0
        %413 = vmatprep.mubr.f32.mxu0 0.0
        %414 = vmatmul.mubr.f32.gmra.mrb[0].mxu0 %v237
        %v415 = vpop.f32.mrb[0].mxu0
        %v416 = vadd.f32 0.0, %v415
        %v417 = vpop.f32.mrb[0].mxu0
        %418 = vmatprep.mubr.f32.mxu0 0.0
        %419 = vmatmul.mubr.f32.gmra.mrb[0].mxu0 %v238
        %v420 = vpop.f32.mrb[0].mxu0
        %v421 = vadd.f32 0.0, %v420
        %v422 = vpop.f32.mrb[0].mxu0
        %423 = vmatprep.mubr.f32.mxu0 0.0
        %424 = vmatmul.mubr.f32.gmra.mrb[0].mxu0 %v239
        %v425 = vpop.f32.mrb[0].mxu0
        %v426 = vadd.f32 0.0, %v425
        %v427 = vpop.f32.mrb[0].mxu0
        %428 = vmatprep.mubr.f32.mxu0 0.0
        %429 = vmatmul.mubr.f32.gmra.mrb[0].mxu0 %v240
        %v430 = vpop.f32.mrb[0].mxu0
        %v431 = vadd.f32 0.0, %v430
        %v432 = vpop.f32.mrb[0].mxu0
        %433 = vmatprep.mubr.f32.mxu0 0.0
        %434 = vmatmul.mubr.f32.gmra.mrb[0].mxu0 %v241
        %v435 = vpop.f32.mrb[0].mxu0
        %v436 = vadd.f32 0.0, %v435
        %v437 = vpop.f32.mrb[0].mxu0
        %438 = vmatprep.mubr.f32.mxu0 0.0
        %439 = vmatmul.mubr.f32.gmra.mrb[0].mxu0 %v242
        %v440 = vpop.f32.mrb[0].mxu0
        %v441 = vadd.f32 0.0, %v440
        %v442 = vpop.f32.mrb[0].mxu0
        %443 = vmatprep.mubr.f32.mxu0 0.0
        %444 = vmatmul.mubr.f32.gmra.mrb[0].mxu0 %v243
        %v445 = vpop.f32.mrb[0].mxu0
        %v446 = vadd.f32 0.0, %v445
        %v447 = vpop.f32.mrb[0].mxu0
        %448 = vmatprep.mubr.f32.mxu0 0.0
        %449 = vmatmul.mubr.f32.gmra.mrb[0].mxu0 %v244
        %v450 = vpop.f32.mrb[0].mxu0
        %v451 = vadd.f32 0.0, %v450
        %v452 = vpop.f32.mrb[0].mxu0
        %453 = vmatprep.mubr.f32.mxu0 0.0
        %454 = vmatmul.mubr.f32.gmra.mrb[0].mxu0 %v245
        %v455 = vpop.f32.mrb[0].mxu0
        %v456 = vadd.f32 0.0, %v455
        %v457 = vpop.f32.mrb[0].mxu0
        %458 = vmatprep.mubr.f32.mxu0 0.0
        %459 = vmatmul.mubr.f32.gmra.mrb[0].mxu0 %v246
        %v460 = vpop.f32.mrb[0].mxu0
        %v461 = vadd.f32 0.0, %v460
        %v462 = vpop.f32.mrb[0].mxu0
        %463 = vmatprep.mubr.f32.mxu0 0.0
        %464 = vmatmul.mubr.f32.gmra.mrb[0].mxu0 %v247
        %v465 = vpop.f32.mrb[0].mxu0
        %v466 = vadd.f32 0.0, %v465
        %v467 = vpop.f32.mrb[0].mxu0
        %468 = vmatprep.mubr.f32.mxu0 0.0
        %469 = vmatmul.mubr.f32.gmra.mrb[0].mxu0 %v248
        %v470 = vpop.f32.mrb[0].mxu0
        %v471 = vadd.f32 0.0, %v470
        %v472 = vpop.f32.mrb[0].mxu0
        %473 = vmatprep.mubr.f32.mxu0 0.0
        %474 = vmatmul.mubr.f32.gmra.mrb[0].mxu0 %v249
        %v475 = vpop.f32.mrb[0].mxu0
        %v476 = vadd.f32 0.0, %v475
        %v477 = vpop.f32.mrb[0].mxu0
        %478 = vmatprep.mubr.f32.mxu0 0.0
        %479 = vmatmul.mubr.f32.gmra.mrb[0].mxu0 %v250
        %v480 = vpop.f32.mrb[0].mxu0
        %v481 = vadd.f32 0.0, %v480
        %v482 = vpop.f32.mrb[0].mxu0
        %483 = vmatprep.mubr.f32.mxu0 0.0
        %484 = vmatmul.mubr.f32.gmra.mrb[0].mxu0 %v251
        %v485 = vpop.f32.mrb[0].mxu0
        %v486 = vadd.f32 0.0, %v485
        %v487 = vpop.f32.mrb[0].mxu0
        %488 = vmatprep.mubr.f32.mxu0 0.0
        %489 = vmatmul.mubr.f32.gmra.mrb[0].mxu0 %v252
        %v490 = vpop.f32.mrb[0].mxu0
        %v491 = vadd.f32 0.0, %v490
        %v492 = vpop.f32.mrb[0].mxu0
        %493 = vmatprep.mubr.f32.mxu0 0.0
        %494 = vmatmul.mubr.f32.gmra.mrb[0].mxu0 %v253
        %v495 = vpop.f32.mrb[0].mxu0
        %v496 = vadd.f32 0.0, %v495
        %v497 = vpop.f32.mrb[0].mxu0
        %498 = vmatprep.mubr.f32.mxu0 0.0
        %499 = vmatmul.mubr.f32.gmra.mrb[0].mxu0 %v254
        %v500 = vpop.f32.mrb[0].mxu0
        %v501 = vadd.f32 0.0, %v500
        %v502 = vpop.f32.mrb[0].mxu0
        %503 = vmatprep.mubr.f32.mxu0 0.0
        %504 = vmatmul.mubr.f32.gmra.mrb[0].mxu0 %v255
        %v505 = vpop.f32.mrb[0].mxu0
        %v506 = vadd.f32 0.0, %v505
        %v507 = vpop.f32.mrb[0].mxu0
        %508 = vmatprep.mubr.f32.mxu0 0.0
        %509 = vmatmul.mubr.f32.gmra.mrb[0].mxu0 %v256
        %v510 = vpop.f32.mrb[0].mxu0
        %v511 = vadd.f32 0.0, %v510
        %v512 = vpop.f32.mrb[0].mxu0
        %513 = vmatprep.mubr.f32.mxu0 0.0
        %514 = vmatmul.mubr.f32.gmra.mrb[0].mxu0 %v257
        %v515 = vpop.f32.mrb[0].mxu0
        %v516 = vadd.f32 0.0, %v515
        %v517 = vpop.f32.mrb[0].mxu0
        %518 = vmatprep.mubr.f32.mxu0 0.0
        %519 = vmatmul.mubr.f32.gmra.mrb[0].mxu0 %v258
        %v520 = vpop.f32.mrb[0].mxu0
        %v521 = vadd.f32 0.0, %v520
        %v522 = vpop.f32.mrb[0].mxu0
        %523 = vmatprep.mubr.f32.mxu0 0.0
        %524 = vmatmul.mubr.f32.gmra.mrb[0].mxu0 %v259
        %v525 = vpop.f32.mrb[0].mxu0
        %v526 = vadd.f32 0.0, %v525
        %v527 = vpop.f32.mrb[0].mxu0
        %528 = vmatprep.mubr.f32.mxu0 0.0
        %529 = vmatmul.mubr.f32.gmra.mrb[0].mxu0 %v260
        %v530 = vpop.f32.mrb[0].mxu0
        %v531 = vadd.f32 0.0, %v530
        %v532 = vpop.f32.mrb[0].mxu0
        %533 = vmatprep.mubr.f32.mxu0 0.0
        %534 = vmatmul.mubr.f32.gmra.mrb[0].mxu0 %v261
        %v535 = vpop.f32.mrb[0].mxu0
        %v536 = vadd.f32 0.0, %v535
        %v537 = vpop.f32.mrb[0].mxu0
        %538 = vmatprep.mubr.f32.mxu0 0.0
        %539 = vmatmul.mubr.f32.gmra.mrb[0].mxu0 %v262
        %v540 = vpop.f32.mrb[0].mxu0
        %v541 = vadd.f32 0.0, %v540
        %v542 = vpop.f32.mrb[0].mxu0
        %543 = vmatprep.mubr.f32.mxu0 0.0
        %544 = vmatmul.mubr.f32.gmra.mrb[0].mxu0 %v263
        %v545 = vpop.f32.mrb[0].mxu0
        %v546 = vadd.f32 0.0, %v545
        %v547 = vpop.f32.mrb[0].mxu0
        %548 = vmatprep.mubr.f32.mxu0 0.0
        %549 = vmatmul.mubr.f32.gmra.mrb[0].mxu0 %v264
        %v550 = vpop.f32.mrb[0].mxu0
        %v551 = vadd.f32 0.0, %v550
        %v552 = vpop.f32.mrb[0].mxu0
        %553 = vmatprep.mubr.f32.mxu0 0.0
        %554 = vmatmul.mubr.f32.gmra.mrb[0].mxu0 %v265
        %v555 = vpop.f32.mrb[0].mxu0
        %v556 = vadd.f32 0.0, %v555
        %v557 = vpop.f32.mrb[0].mxu0
        %558 = vmatprep.mubr.f32.mxu0 0.0
        %559 = vmatmul.mubr.f32.gmra.mrb[0].mxu0 %v266
        %v560 = vpop.f32.mrb[0].mxu0
        %v561 = vadd.f32 0.0, %v560
        %v562 = vpop.f32.mrb[0].mxu0
        %563 = vmatprep.mubr.f32.mxu0 0.0
        %564 = vmatmul.mubr.f32.gmra.mrb[0].mxu0 %v267
        %v565 = vpop.f32.mrb[0].mxu0
        %v566 = vadd.f32 0.0, %v565
        %v567 = vpop.f32.mrb[0].mxu0
        %568 = vmatprep.mubr.f32.mxu0 0.0
        %569 = vmatmul.mubr.f32.gmra.mrb[0].mxu0 %v268
        %v570 = vpop.f32.mrb[0].mxu0
        %v571 = vadd.f32 0.0, %v570
        %v572 = vpop.f32.mrb[0].mxu0
        %573 = vmatprep.mubr.f32.mxu0 0.0
        %574 = vmatmul.mubr.f32.gmra.mrb[0].mxu0 %v269
        %v575 = vpop.f32.mrb[0].mxu0
        %v576 = vadd.f32 0.0, %v575
        %v577 = vpop.f32.mrb[0].mxu0
        %578 = vmatprep.mubr.f32.mxu0 0.0
        %579 = vmatmul.mubr.f32.gmra.mrb[0].mxu0 %v270
        %v580 = vpop.f32.mrb[0].mxu0
        %v581 = vadd.f32 0.0, %v580
        %v582 = vpop.f32.mrb[0].mxu0
        %583 = vmatprep.mubr.f32.mxu0 0.0
        %584 = vmatmul.mubr.f32.gmra.mrb[0].mxu0 %v271
        %v585 = vpop.f32.mrb[0].mxu0
        %v586 = vadd.f32 0.0, %v585
        %v587 = vpop.f32.mrb[0].mxu0
        %588 = vmatprep.mubr.f32.mxu0 0.0
        %589 = vmatmul.mubr.f32.gmra.mrb[0].mxu0 %v272
        %v590 = vpop.f32.mrb[0].mxu0
        %v591 = vadd.f32 0.0, %v590
        %v592 = vpop.f32.mrb[0].mxu0
        %593 = vmatprep.mubr.f32.mxu0 0.0
        %594 = vmatmul.mubr.f32.gmra.mrb[0].mxu0 %v273
        %v595 = vpop.f32.mrb[0].mxu0
        %v596 = vadd.f32 0.0, %v595
        %v597 = vpop.f32.mrb[0].mxu0
        %598 = vmatprep.mubr.f32.mxu0 0.0
        %599 = vmatmul.mubr.f32.gmra.mrb[0].mxu0 %v274
        %v600 = vpop.f32.mrb[0].mxu0
        %v601 = vadd.f32 0.0, %v600
        %v602 = vpop.f32.mrb[0].mxu0
        %603 = vmatprep.mubr.f32.mxu0 0.0
        %604 = vmatmul.mubr.f32.gmra.mrb[0].mxu0 %v275
        %v605 = vpop.f32.mrb[0].mxu0
        %v606 = vadd.f32 0.0, %v605
        %v607 = vpop.f32.mrb[0].mxu0
        %608 = vmatprep.mubr.f32.mxu0 0.0
        %609 = vmatmul.mubr.f32.gmra.mrb[0].mxu0 %v276
        %v610 = vpop.f32.mrb[0].mxu0
        %v611 = vadd.f32 0.0, %v610
        %v612 = vpop.f32.mrb[0].mxu0
        %613 = vmatprep.mubr.f32.mxu0 0.0
        %614 = vmatmul.mubr.f32.gmra.mrb[0].mxu0 %v277
        %v615 = vpop.f32.mrb[0].mxu0
        %v616 = vadd.f32 0.0, %v615
        %v617 = vpop.f32.mrb[0].mxu0
        %618 = vmatprep.mubr.f32.mxu0 0.0
        %619 = vmatmul.mubr.f32.gmra.mrb[0].mxu0 %v278
        %v620 = vpop.f32.mrb[0].mxu0
        %v621 = vadd.f32 0.0, %v620
        %v622 = vpop.f32.mrb[0].mxu0
        %623 = vmatprep.mubr.f32.mxu0 0.0
        %624 = vmatmul.mubr.f32.gmra.mrb[0].mxu0 %v279
        %v625 = vpop.f32.mrb[0].mxu0
        %v626 = vadd.f32 0.0, %v625
        %v627 = vpop.f32.mrb[0].mxu0
        %628 = vmatprep.mubr.f32.mxu0 0.0
        %629 = vmatmul.mubr.f32.gmra.mrb[0].mxu0 %v280
        %v630 = vpop.f32.mrb[0].mxu0
        %v631 = vadd.f32 0.0, %v630
        %v632 = vpop.f32.mrb[0].mxu0
        %633 = vmatprep.mubr.f32.mxu0 0.0
        %634 = vmatmul.mubr.f32.gmra.mrb[0].mxu0 %v281
        %v635 = vpop.f32.mrb[0].mxu0
        %v636 = vadd.f32 0.0, %v635
        %v637 = vpop.f32.mrb[0].mxu0
        %638 = vmatprep.mubr.f32.mxu0 0.0
        %639 = vmatmul.mubr.f32.gmra.mrb[0].mxu0 %v282
        %v640 = vpop.f32.mrb[0].mxu0
        %v641 = vadd.f32 0.0, %v640
        %v642 = vpop.f32.mrb[0].mxu0
        %643 = vmatprep.mubr.f32.mxu0 0.0
        %644 = vmatmul.mubr.f32.gmra.mrb[0].mxu0 %v283
        %v645 = vpop.f32.mrb[0].mxu0
        %v646 = vadd.f32 0.0, %v645
        %v647 = vpop.f32.mrb[0].mxu0
        %648 = vmatprep.mubr.f32.mxu0 0.0
        %649 = vmatmul.mubr.f32.gmra.mrb[0].mxu0 %v284
        %v650 = vpop.f32.mrb[0].mxu0
        %v651 = vadd.f32 0.0, %v650
        %v652 = vpop.f32.mrb[0].mxu0
        %653 = vmatprep.mubr.f32.mxu0 0.0
        %654 = vmatmul.mubr.f32.gmra.mrb[0].mxu0 %v285
        %v655 = vpop.f32.mrb[0].mxu0
        %v656 = vadd.f32 0.0, %v655
        %v657 = vpop.f32.mrb[0].mxu0
        %658 = vmatprep.mubr.f32.mxu0 0.0
        %659 = vmatmul.mubr.f32.gmra.mrb[0].mxu0 %v286
        %v660 = vpop.f32.mrb[0].mxu0
        %v661 = vadd.f32 0.0, %v660
        %v662 = vpop.f32.mrb[0].mxu0
        %663 = vmatprep.mubr.f32.mxu0 0.0
        %664 = vmatmul.mubr.f32.gmra.mrb[0].mxu0 %v287
        %v665 = vpop.f32.mrb[0].mxu0
        %v666 = vadd.f32 0.0, %v665
        %v667 = vpop.f32.mrb[0].mxu0
        %668 = vmatprep.mubr.f32.mxu0 0.0
        %669 = vmatmul.mubr.f32.gmra.mrb[0].mxu0 %v288
        %v670 = vpop.f32.mrb[0].mxu0
        %v671 = vadd.f32 0.0, %v670
        %v672 = vpop.f32.mrb[0].mxu0
        %673 = vmatprep.mubr.f32.mxu0 0.0
        %674 = vmatmul.mubr.f32.gmra.mrb[0].mxu0 %v289
        %v675 = vpop.f32.mrb[0].mxu0
        %v676 = vadd.f32 0.0, %v675
        %v677 = vpop.f32.mrb[0].mxu0
        %678 = vmatprep.mubr.f32.mxu0 0.0
        %679 = vmatmul.mubr.f32.gmra.mrb[0].mxu0 %v290
        %v680 = vpop.f32.mrb[0].mxu0
        %v681 = vadd.f32 0.0, %v680
        %v682 = vpop.f32.mrb[0].mxu0
        %683 = vmatprep.mubr.f32.mxu0 0.0
        %684 = vmatmul.mubr.f32.gmra.mrb[0].mxu0 %v291
        %v685 = vpop.f32.mrb[0].mxu0
        %v686 = vadd.f32 0.0, %v685
        %v687 = vpop.f32.mrb[0].mxu0
        %688 = vmatprep.mubr.f32.mxu0 0.0
        %689 = vmatmul.mubr.f32.gmra.mrb[0].mxu0 %v292
        %v690 = vpop.f32.mrb[0].mxu0
        %v691 = vadd.f32 0.0, %v690
        %v692 = vpop.f32.mrb[0].mxu0
        %693 = vdwg.mxu0
        %694 = vst [vmem:[%s222] sm:$0xff] %v376
        %695 = vst [vmem:[%s222 + $0x8] sm:$0xff] %v381
        %696 = vst [vmem:[%s222 + $0x10] sm:$0xff] %v386
        %697 = vst [vmem:[%s222 + $0x18] sm:$0xff] %v391
        %698 = vst [vmem:[%s222 + $0x20] sm:$0xff] %v396
        %699 = vst [vmem:[%s222 + $0x28] sm:$0xff] %v401
        %700 = vst [vmem:[%s222 + $0x30] sm:$0xff] %v406
        %701 = vst [vmem:[%s222 + $0x38] sm:$0xff] %v411
        %702 = vst [vmem:[%s222 + $0x40] sm:$0xff] %v416
        %703 = vst [vmem:[%s222 + $0x48] sm:$0xff] %v421
        %704 = vst [vmem:[%s222 + $0x50] sm:$0xff] %v426
        %705 = vst [vmem:[%s222 + $0x58] sm:$0xff] %v431
        %706 = vst [vmem:[%s222 + $0x60] sm:$0xff] %v436
        %707 = vst [vmem:[%s222 + $0x68] sm:$0xff] %v441
        %708 = vst [vmem:[%s222 + $0x70] sm:$0xff] %v446
        %709 = vst [vmem:[%s222 + $0x78] sm:$0xff] %v451
        %710 = vst [vmem:[%s222 + $0x80] sm:$0xff] %v456
        %711 = vst [vmem:[%s222 + $0x88] sm:$0xff] %v461
        %712 = vst [vmem:[%s222 + $0x90] sm:$0xff] %v466
        %713 = vst [vmem:[%s222 + $0x98] sm:$0xff] %v471
        %714 = vst [vmem:[%s222 + $0xa0] sm:$0xff] %v476
        %715 = vst [vmem:[%s222 + $0xa8] sm:$0xff] %v481
        %716 = vst [vmem:[%s222 + $0xb0] sm:$0xff] %v486
        %717 = vst [vmem:[%s222 + $0xb8] sm:$0xff] %v491
        %718 = vst [vmem:[%s222 + $0xc0] sm:$0xff] %v496
        %719 = vst [vmem:[%s222 + $0xc8] sm:$0xff] %v501
        %720 = vst [vmem:[%s222 + $0xd0] sm:$0xff] %v506
        %721 = vst [vmem:[%s222 + $0xd8] sm:$0xff] %v511
        %722 = vst [vmem:[%s222 + $0xe0] sm:$0xff] %v516
        %723 = vst [vmem:[%s222 + $0xe8] sm:$0xff] %v521
        %724 = vst [vmem:[%s222 + $0xf0] sm:$0xff] %v526
        %725 = vst [vmem:[%s222 + $0xf8] sm:$0xff] %v531
        %726 = vst [vmem:[%s222 + $0x100] sm:$0xff] %v536
        %727 = vst [vmem:[%s222 + $0x108] sm:$0xff] %v541
        %728 = vst [vmem:[%s222 + $0x110] sm:$0xff] %v546
        %729 = vst [vmem:[%s222 + $0x118] sm:$0xff] %v551
        %730 = vst [vmem:[%s222 + $0x120] sm:$0xff] %v556
        %731 = vst [vmem:[%s222 + $0x128] sm:$0xff] %v561
        %732 = vst [vmem:[%s222 + $0x130] sm:$0xff] %v566
        %733 = vst [vmem:[%s222 + $0x138] sm:$0xff] %v571
        %734 = vst [vmem:[%s222 + $0x140] sm:$0xff] %v576
        %735 = vst [vmem:[%s222 + $0x148] sm:$0xff] %v581
        %736 = vst [vmem:[%s222 + $0x150] sm:$0xff] %v586
        %737 = vst [vmem:[%s222 + $0x158] sm:$0xff] %v591
        %738 = vst [vmem:[%s222 + $0x160] sm:$0xff] %v596
        %739 = vst [vmem:[%s222 + $0x168] sm:$0xff] %v601
        %740 = vst [vmem:[%s222 + $0x170] sm:$0xff] %v606
        %741 = vst [vmem:[%s222 + $0x178] sm:$0xff] %v611
        %742 = vst [vmem:[%s222 + $0x180] sm:$0xff] %v616
        %743 = vst [vmem:[%s222 + $0x188] sm:$0xff] %v621
        %744 = vst [vmem:[%s222 + $0x190] sm:$0xff] %v626
        %745 = vst [vmem:[%s222 + $0x198] sm:$0xff] %v631
        %746 = vst [vmem:[%s222 + $0x1a0] sm:$0xff] %v636
        %747 = vst [vmem:[%s222 + $0x1a8] sm:$0xff] %v641
        %748 = vst [vmem:[%s222 + $0x1b0] sm:$0xff] %v646
        %749 = vst [vmem:[%s222 + $0x1b8] sm:$0xff] %v651
        %750 = vst [vmem:[%s222 + $0x1c0] sm:$0xff] %v656
        %751 = vst [vmem:[%s222 + $0x1c8] sm:$0xff] %v661
        %752 = vst [vmem:[%s222 + $0x1d0] sm:$0xff] %v666
        %753 = vst [vmem:[%s222 + $0x1d8] sm:$0xff] %v671
        %754 = vst [vmem:[%s222 + $0x1e0] sm:$0xff] %v676
        %755 = vst [vmem:[%s222 + $0x1e8] sm:$0xff] %v681
        %756 = vst [vmem:[%s222 + $0x1f0] sm:$0xff] %v686
        %757 = vst [vmem:[%s222 + $0x1f8] sm:$0xff] %v691
        %p758 = scmp.eq.s32.totalorder %s24, 0
        // Predicated region
        $region37: #{tpu_custom_call.1} parent=27 // pred_check
          %p759 = pneg %p758
        $region38: #{tpu_custom_call.1} parent=27 // pred_check_branch
          %761 = sbr.rel (%p759) target = $region40
        $region39: #{tpu_custom_call.1} parent=27 // pred_region
          %762 = vst [vmem:[#allocation8] sm:$0x1] 0.0
          %763 = vst [vmem:[#allocation10] sm:$0x1] 0.0
        $region40: #{tpu_custom_call.1} parent=27 // pred_fallthru
          _
        %v764 = vld [vmem:[#allocation8] sm:$0x1]
        %v765 = vadd.f32 %v376, %v381
        %v766 = vadd.f32 %v765, %v386
        %v767 = vadd.f32 %v766, %v391
        %v768 = vadd.f32 %v767, %v396
        %v769 = vadd.f32 %v768, %v401
        %v770 = vadd.f32 %v769, %v406
        %v771 = vadd.f32 %v770, %v411
        %v772 = vadd.f32 %v771, %v416
        %v773 = vadd.f32 %v772, %v421
        %v774 = vadd.f32 %v773, %v426
        %v775 = vadd.f32 %v774, %v431
        %v776 = vadd.f32 %v775, %v436
        %v777 = vadd.f32 %v776, %v441
        %v778 = vadd.f32 %v777, %v446
        %v779 = vadd.f32 %v778, %v451
        %v780 = vadd.f32 %v779, %v456
        %v781 = vadd.f32 %v780, %v461
        %v782 = vadd.f32 %v781, %v466
        %v783 = vadd.f32 %v782, %v471
        %v784 = vadd.f32 %v783, %v476
        %v785 = vadd.f32 %v784, %v481
        %v786 = vadd.f32 %v785, %v486
        %v787 = vadd.f32 %v786, %v491
        %v788 = vadd.f32 %v787, %v496
        %v789 = vadd.f32 %v788, %v501
        %v790 = vadd.f32 %v789, %v506
        %v791 = vadd.f32 %v790, %v511
        %v792 = vadd.f32 %v791, %v516
        %v793 = vadd.f32 %v792, %v521
        %v794 = vadd.f32 %v793, %v526
        %v795 = vadd.f32 %v794, %v531
        %v796 = vadd.f32 %v795, %v536
        %v797 = vadd.f32 %v796, %v541
        %v798 = vadd.f32 %v797, %v546
        %v799 = vadd.f32 %v798, %v551
        %v800 = vadd.f32 %v799, %v556
        %v801 = vadd.f32 %v800, %v561
        %v802 = vadd.f32 %v801, %v566
        %v803 = vadd.f32 %v802, %v571
        %v804 = vadd.f32 %v803, %v576
        %v805 = vadd.f32 %v804, %v581
        %v806 = vadd.f32 %v805, %v586
        %v807 = vadd.f32 %v806, %v591
        %v808 = vadd.f32 %v807, %v596
        %v809 = vadd.f32 %v808, %v601
        %v810 = vadd.f32 %v809, %v606
        %v811 = vadd.f32 %v810, %v611
        %v812 = vadd.f32 %v811, %v616
        %v813 = vadd.f32 %v812, %v621
        %v814 = vadd.f32 %v813, %v626
        %v815 = vadd.f32 %v814, %v631
        %v816 = vadd.f32 %v815, %v636
        %v817 = vadd.f32 %v816, %v641
        %v818 = vadd.f32 %v817, %v646
        %v819 = vadd.f32 %v818, %v651
        %v820 = vadd.f32 %v819, %v656
        %v821 = vadd.f32 %v820, %v661
        %v822 = vadd.f32 %v821, %v666
        %v823 = vadd.f32 %v822, %v671
        %v824 = vadd.f32 %v823, %v676
        %v825 = vadd.f32 %v824, %v681
        %v826 = vadd.f32 %v825, %v686
        %v827 = vadd.f32 %v826, %v691
        %v828 = vrot.slane %v827, 4
        %v829 = vadd.f32 %v827, %v828
        %v830 = vrot.slane %v829, 2
        %v831 = vadd.f32 %v829, %v830
        %v832 = vrot.slane %v831, 1
        %v833 = vadd.f32 %v831, %v832
        %v834 = vadd.f32 %v764, %v833
        %835 = vst [vmem:[#allocation8] sm:$0x1] %v834
        %v836 = vld [vmem:[#allocation10] sm:$0x1]
        %v837 = vmul.f32 %v376, %v376
        %v838 = vmul.f32 %v381, %v381
        %v839 = vmul.f32 %v386, %v386
        %v840 = vmul.f32 %v391, %v391
        %v841 = vmul.f32 %v396, %v396
        %v842 = vmul.f32 %v401, %v401
        %v843 = vmul.f32 %v406, %v406
        %v844 = vmul.f32 %v411, %v411
        %v845 = vmul.f32 %v416, %v416
        %v846 = vmul.f32 %v421, %v421
        %v847 = vmul.f32 %v426, %v426
        %v848 = vmul.f32 %v431, %v431
        %v849 = vmul.f32 %v436, %v436
        %v850 = vmul.f32 %v441, %v441
        %v851 = vmul.f32 %v446, %v446
        %v852 = vmul.f32 %v451, %v451
        %v853 = vmul.f32 %v456, %v456
        %v854 = vmul.f32 %v461, %v461
        %v855 = vmul.f32 %v466, %v466
        %v856 = vmul.f32 %v471, %v471
        %v857 = vmul.f32 %v476, %v476
        %v858 = vmul.f32 %v481, %v481
        %v859 = vmul.f32 %v486, %v486
        %v860 = vmul.f32 %v491, %v491
        %v861 = vmul.f32 %v496, %v496
        %v862 = vmul.f32 %v501, %v501
        %v863 = vmul.f32 %v506, %v506
        %v864 = vmul.f32 %v511, %v511
        %v865 = vmul.f32 %v516, %v516
        %v866 = vmul.f32 %v521, %v521
        %v867 = vmul.f32 %v526, %v526
        %v868 = vmul.f32 %v531, %v531
        %v869 = vmul.f32 %v536, %v536
        %v870 = vmul.f32 %v541, %v541
        %v871 = vmul.f32 %v546, %v546
        %v872 = vmul.f32 %v551, %v551
        %v873 = vmul.f32 %v556, %v556
        %v874 = vmul.f32 %v561, %v561
        %v875 = vmul.f32 %v566, %v566
        %v876 = vmul.f32 %v571, %v571
        %v877 = vmul.f32 %v576, %v576
        %v878 = vmul.f32 %v581, %v581
        %v879 = vmul.f32 %v586, %v586
        %v880 = vmul.f32 %v591, %v591
        %v881 = vmul.f32 %v596, %v596
        %v882 = vmul.f32 %v601, %v601
        %v883 = vmul.f32 %v606, %v606
        %v884 = vmul.f32 %v611, %v611
        %v885 = vmul.f32 %v616, %v616
        %v886 = vmul.f32 %v621, %v621
        %v887 = vmul.f32 %v626, %v626
        %v888 = vmul.f32 %v631, %v631
        %v889 = vmul.f32 %v636, %v636
        %v890 = vmul.f32 %v641, %v641
        %v891 = vmul.f32 %v646, %v646
        %v892 = vmul.f32 %v651, %v651
        %v893 = vmul.f32 %v656, %v656
        %v894 = vmul.f32 %v661, %v661
        %v895 = vmul.f32 %v666, %v666
        %v896 = vmul.f32 %v671, %v671
        %v897 = vmul.f32 %v676, %v676
        %v898 = vmul.f32 %v681, %v681
        %v899 = vmul.f32 %v686, %v686
        %v900 = vmul.f32 %v691, %v691
        %v901 = vadd.f32 %v837, %v838
        %v902 = vadd.f32 %v901, %v839
        %v903 = vadd.f32 %v902, %v840
        %v904 = vadd.f32 %v903, %v841
        %v905 = vadd.f32 %v904, %v842
        %v906 = vadd.f32 %v905, %v843
        %v907 = vadd.f32 %v906, %v844
        %v908 = vadd.f32 %v907, %v845
        %v909 = vadd.f32 %v908, %v846
        %v910 = vadd.f32 %v909, %v847
        %v911 = vadd.f32 %v910, %v848
        %v912 = vadd.f32 %v911, %v849
        %v913 = vadd.f32 %v912, %v850
        %v914 = vadd.f32 %v913, %v851
        %v915 = vadd.f32 %v914, %v852
        %v916 = vadd.f32 %v915, %v853
        %v917 = vadd.f32 %v916, %v854
        %v918 = vadd.f32 %v917, %v855
        %v919 = vadd.f32 %v918, %v856
        %v920 = vadd.f32 %v919, %v857
        %v921 = vadd.f32 %v920, %v858
        %v922 = vadd.f32 %v921, %v859
        %v923 = vadd.f32 %v922, %v860
        %v924 = vadd.f32 %v923, %v861
        %v925 = vadd.f32 %v924, %v862
        %v926 = vadd.f32 %v925, %v863
        %v927 = vadd.f32 %v926, %v864
        %v928 = vadd.f32 %v927, %v865
        %v929 = vadd.f32 %v928, %v866
        %v930 = vadd.f32 %v929, %v867
        %v931 = vadd.f32 %v930, %v868
        %v932 = vadd.f32 %v931, %v869
        %v933 = vadd.f32 %v932, %v870
        %v934 = vadd.f32 %v933, %v871
        %v935 = vadd.f32 %v934, %v872
        %v936 = vadd.f32 %v935, %v873
        %v937 = vadd.f32 %v936, %v874
        %v938 = vadd.f32 %v937, %v875
        %v939 = vadd.f32 %v938, %v876
        %v940 = vadd.f32 %v939, %v877
        %v941 = vadd.f32 %v940, %v878
        %v942 = vadd.f32 %v941, %v879
        %v943 = vadd.f32 %v942, %v880
        %v944 = vadd.f32 %v943, %v881
        %v945 = vadd.f32 %v944, %v882
        %v946 = vadd.f32 %v945, %v883
        %v947 = vadd.f32 %v946, %v884
        %v948 = vadd.f32 %v947, %v885
        %v949 = vadd.f32 %v948, %v886
        %v950 = vadd.f32 %v949, %v887
        %v951 = vadd.f32 %v950, %v888
        %v952 = vadd.f32 %v951, %v889
        %v953 = vadd.f32 %v952, %v890
        %v954 = vadd.f32 %v953, %v891
        %v955 = vadd.f32 %v954, %v892
        %v956 = vadd.f32 %v955, %v893
        %v957 = vadd.f32 %v956, %v894
        %v958 = vadd.f32 %v957, %v895
        %v959 = vadd.f32 %v958, %v896
        %v960 = vadd.f32 %v959, %v897
        %v961 = vadd.f32 %v960, %v898
        %v962 = vadd.f32 %v961, %v899
        %v963 = vadd.f32 %v962, %v900
        %v964 = vrot.slane %v963, 4
        %v965 = vadd.f32 %v963, %v964
        %v966 = vrot.slane %v965, 2
        %v967 = vadd.f32 %v965, %v966
        %v968 = vrot.slane %v967, 1
        %v969 = vadd.f32 %v967, %v968
        %v970 = vadd.f32 %v836, %v969
        %971 = vst [vmem:[#allocation10] sm:$0x1] %v970
        %s972 = sand.u32 %s79, 1
        %s973 = scalar_lea.sflag [#allocation4], %s972
        %s974 = sand.u32 %s79, 1
        %s975 = smul.addr %s974, 512
        %s976 = scalar_lea.vmem [#allocation7], %s975
        // Predicated region
        $region41: #{tpu_custom_call.1} parent=27 // pred_check
          %p977 = pneg %p89
        $region42: #{tpu_custom_call.1} parent=27 // pred_check_branch
          %979 = sbr.rel (%p977) target = $region44
        $region43: #{tpu_custom_call.1} parent=27 // pred_region
          %s980 = smul.u32 64, %s24
          %s982 = ssub.s32 8192, 8192
          %983 = vsyncadd %s973, %s982
          %s984 = smul.addr %s980, 128
          %s985 = scalar_lea.hbm %s2, %s984
          %s986 = sshll.u32 %s976, 4
          %s987 = int_to_ptr.vmem [resolvable:$true] %s986
          %992 = dma.vmem_to_hbm [thread:$0]  %s987, 8192, %s985, %s973, 128, 128, 8
        $region44: #{tpu_custom_call.1} parent=27 // pred_fallthru
          _
        // Predicated region
        $region45: #{tpu_custom_call.1} parent=27 // pred_check
          %p993 = pneg %p110
        $region46: #{tpu_custom_call.1} parent=27 // pred_check_branch
          %995 = sbr.rel (%p993) target = $region48
        $region47: #{tpu_custom_call.1} parent=27 // pred_region
          %s997 = ssub.s32 16, 16
          %998 = vsyncadd [#allocation9], %s997
          %s1000 = sshll.u32 [#allocation8], 4
          %s1001 = int_to_ptr.vmem [resolvable:$true] %s1000
          %1003 = dma.vmem_to_hbm [thread:$0]  %s1001, 16, %s3, [#allocation9]
        $region48: #{tpu_custom_call.1} parent=27 // pred_fallthru
          _
        // Predicated region
        $region49: #{tpu_custom_call.1} parent=27 // pred_check
          %p1004 = pneg %p131
        $region50: #{tpu_custom_call.1} parent=27 // pred_check_branch
          %1006 = sbr.rel (%p1004) target = $region52
        $region51: #{tpu_custom_call.1} parent=27 // pred_region
          %s1008 = ssub.s32 16, 16
          %1009 = vsyncadd [#allocation9], %s1008
          %s1011 = sshll.u32 [#allocation10], 4
          %s1012 = int_to_ptr.vmem [resolvable:$true] %s1011
          %1014 = dma.vmem_to_hbm [thread:$0]  %s1012, 16, %s4, [#allocation9]
        $region52: #{tpu_custom_call.1} parent=27 // pred_fallthru
          _
        // Predicated region
        $region53: #{tpu_custom_call.1} parent=27 // pred_check
          %p1015 = pneg %p110
        $region54: #{tpu_custom_call.1} parent=27 // pred_check_branch
          %1017 = sbr.rel (%p1015) target = $region56
        $region55: #{tpu_custom_call.1} parent=27 // pred_region
          %1018 = dma.done [#allocation9], 16
        $region56: #{tpu_custom_call.1} parent=27 // pred_fallthru
          _
        // Predicated region
        $region57: #{tpu_custom_call.1} parent=27 // pred_check
          %p1019 = pneg %p131
        $region58: #{tpu_custom_call.1} parent=27 // pred_check_branch
          %1021 = sbr.rel (%p1019) target = $region60
        $region59: #{tpu_custom_call.1} parent=27 // pred_region
          %1022 = dma.done [#allocation9], 16
        $region60: #{tpu_custom_call.1} parent=27 // pred_fallthru
          _
      $region28: #{tpu_custom_call.1} parent=5 // pred_fallthru
        _
      %p1023 = scmp.le.s32.totalorder 2, %s19
      // Predicated region
      $region61: #{tpu_custom_call.1} parent=5 // pred_check
        %p1024 = pneg %p1023
      $region62: #{tpu_custom_call.1} parent=5 // pred_check_branch
        %1026 = sbr.rel (%p1024) target = $region64
      $region63: #{tpu_custom_call.1} parent=5 // pred_region
        %s1027 = ssub.s32 %s19, 2
        // Predicated region
        $region65: #{tpu_custom_call.1} parent=63 // pred_check
          %p1028 = pneg %p95
        $region66: #{tpu_custom_call.1} parent=63 // pred_check_branch
          %1030 = sbr.rel (%p1028) target = $region68
        $region67: #{tpu_custom_call.1} parent=63 // pred_region
          %s1031 = sand.u32 %s80, 1
          %s1032 = scalar_lea.sflag [#allocation4], %s1031
          %s1033 = sand.u32 %s80, 1
          %s1034 = smul.addr %s1033, 512
          %s1035 = scalar_lea.vmem [#allocation7], %s1034
          %1036 = dma.done %s1032, 8192
        $region68: #{tpu_custom_call.1} parent=63 // pred_fallthru
          _
      $region64: #{tpu_custom_call.1} parent=5 // pred_fallthru
        _
    $region6: #{tpu_custom_call.1} parent=1 // loop_footer
      %s23 = sadd.s32 1, %s19
    $region7: #{tpu_custom_call.1} parent=1 // loop_footer_branch
      %18 = sbr.rel target = $region3
    $region8: #{tpu_custom_call.1} parent=1 // loop_exit
      _
    %1037 = vsyncpa [#allocation3], 1
    %s1038 = scalar_lea.sflag [#allocation3], 1
    %1039 = vsyncpa %s1038, 1
    %1040 = vsyncpa [#allocation6], 1
    %1041 = vsyncpa [#allocation4], 1
    %s1042 = scalar_lea.sflag [#allocation4], 1
    %1043 = vsyncpa %s1042, 1
    %1044 = vsyncpa [#allocation9], 1

</llo_original>
